<compile_context>
chip_gen: v5e
topology: v5e:2x2
jax: 0.10.0
libtpu: 0.0.40
codegen_flags: <defaults>
</compile_context>

<pallas_src>
from collections import namedtuple

import numpy as np
import jax
import jax.numpy as jnp
from jax import lax
from jax.experimental import pallas as pl
from jax.experimental.pallas import tpu as pltpu

Level = namedtuple("Level", ["n_levels", "emb_dim"])

# ----------------------------------------------------------------------------
# Model configuration (synthetic, deterministic)
# ----------------------------------------------------------------------------
INPUT_LEVELS = {
    "years":       Level(30, 4),
    "months":      Level(12, 4),
    "dow":         Level(7, 4),
    "time_of_day": Level(3, 4),
    "parks":       Level(40, 8),
    "leagues":     Level(2, 2),
    "umps":        Level(100, 8),
    "home_away":   Level(2, 2),
    "teams":       Level(30, 16),
    "pitchers":    Level(500, 16),
    "managers":    Level(60, 8),
}
TARGET_SIZES = {"Runs": 10, "Hits": 12}
FEAT_SIZE = 64
BN_EPS = 1e-5

ENV_KEYS = ["years", "months", "dow", "time_of_day", "parks", "leagues", "umps",
            "home_away"]
TEAM_KEYS = ["teams", "pitchers", "managers"]

ENV_IN = sum(INPUT_LEVELS[k].emb_dim for k in ENV_KEYS)            # 36
TEAM_IN = sum(INPUT_LEVELS[k].emb_dim for k in TEAM_KEYS)          # 40
ENV_HID = ENV_IN // 2                                              # 18
TEAM_HID = TEAM_IN // 2                                            # 20
FFN_IN = FEAT_SIZE * 3                                             # 192
FFN_HID = FFN_IN // 2                                              # 96

# classifier layout: (name, offset, n_out, apply_cumsum)
CLASSIFIER_SEGMENTS = []
_off = 0
for _k, _n in TARGET_SIZES.items():
    for _side in ["team", "opp"]:
        CLASSIFIER_SEGMENTS.append((f"{_k}_{_side}", _off, _n, True))
        _off += _n
CLASSIFIER_SEGMENTS.append(("Win", _off, 1, False))
TOTAL_TARGETS = _off + 1                                           # 45

# ---- fused / padded layout constants ---------------------------------------
X_DIM = ENV_IN + 2 * TEAM_IN        # 116 real input lanes (env | team | opp)
X_PAD = 128                         # ones lane sits at index X_DIM (=116)
OUT_PAD = 128                       # 45 real targets, lane-dense output

# Weight slab: four bias-augmented layers tile a [384, 256] bf16 slab exactly
# (no zero-padding waste).  Slot = (row_start, row_stop, col_start, col_stop);
# every offset is a multiple of the bf16 (16, 128) tile.
SLAB_ROWS, SLAB_W = 384, 256
SLOT_L0 = (128, 256, 128, 256)   # x(128)       -> h1(128)      encoders layer 1
SLOT_L1 = (0, 128, 0, 256)       # h1(128)      -> feats(256)   encoders layer 2
SLOT_L2 = (128, 384, 0, 128)     # feats(256)   -> ffn_hid(128)
SLOT_L3 = (256, 384, 128, 256)   # ffn_hid(128) -> targets(128) (ffn_w2·cls·cumsum folded)


# ----------------------------------------------------------------------------
# Deterministic parameter construction (matches the torch module's init style)
# ----------------------------------------------------------------------------
def _normal(key, shape, std):
    return std * jax.random.normal(key, shape, dtype=jnp.float32)


def make_params(seed=0):
    key = jax.random.PRNGKey(seed)
    keys = iter(jax.random.split(key, 128))
    p = {}

    # Embedding tables: normal(mean=0, std=0.01) as in the PyTorch __init__.
    p["emb"] = {
        k: _normal(next(keys), (v.n_levels, v.emb_dim), 0.01)
        for k, v in INPUT_LEVELS.items()
    }

    def linear(in_f, out_f):
        w = _normal(next(keys), (in_f, out_f), 0.05)   # [in, out] layout
        b = _normal(next(keys), (out_f,), 0.05)
        return w, b

    def bn(n):
        gamma = 1.0 + _normal(next(keys), (n,), 0.1)
        beta = _normal(next(keys), (n,), 0.01)
        mean = _normal(next(keys), (n,), 0.01)
        var = 1.0 + jax.random.uniform(next(keys), (n,), dtype=jnp.float32)
        return gamma, beta, mean, var

    def fold_bn(w, b, gamma, beta, mean, var):
        scale = gamma * lax.rsqrt(var + BN_EPS)
        shift = beta - mean * scale
        return w * scale[None, :], b * scale + shift

    # env encoder: Linear(36,18)+BN -> ReLU -> Linear(18,64)+BN -> ReLU
    w, b = linear(ENV_IN, ENV_HID)
    p["env_w1"], p["env_b1"] = fold_bn(w, b, *bn(ENV_HID))
    w, b = linear(ENV_HID, FEAT_SIZE)
    p["env_w2"], p["env_b2"] = fold_bn(w, b, *bn(FEAT_SIZE))

    # team encoder (shared for team and opponent)
    w, b = linear(TEAM_IN, TEAM_HID)
    p["team_w1"], p["team_b1"] = fold_bn(w, b, *bn(TEAM_HID))
    w, b = linear(TEAM_HID, FEAT_SIZE)
    p["team_w2"], p["team_b2"] = fold_bn(w, b, *bn(FEAT_SIZE))

    # ffn: Linear(192,96)+BN -> ReLU -> Linear(96,64)
    w, b = linear(FFN_IN, FFN_HID)
    p["ffn_w1"], p["ffn_b1"] = fold_bn(w, b, *bn(FFN_HID))
    p["ffn_w2"], p["ffn_b2"] = linear(FFN_HID, FEAT_SIZE)

    # Stacked target classifiers -> one [64, TOTAL_TARGETS] matrix.
    cw_parts, cb_parts = [], []
    for _name, _off2, n_out, _cum in CLASSIFIER_SEGMENTS:
        w, b = linear(FEAT_SIZE, n_out)
        cw_parts.append(w)
        cb_parts.append(b)
    p["cls_w"] = jnp.concatenate(cw_parts, axis=1)
    p["cls_b"] = jnp.concatenate(cb_parts, axis=0)
    return p


# ----------------------------------------------------------------------------
# Glue: fuse the network into 4 bias-augmented matmuls packed into one slab
# ----------------------------------------------------------------------------
def _block_diag(mats):
    rows = sum(m.shape[0] for m in mats)
    cols = sum(m.shape[1] for m in mats)
    out = jnp.zeros((rows, cols), jnp.float32)
    r = c = 0
    for m in mats:
        out = out.at[r:r + m.shape[0], c:c + m.shape[1]].set(m)
        r += m.shape[0]
        c += m.shape[1]
    return out


def _aug_layer(w, b, in_pad, out_pad, emit_ones_col):
    """Bias-augmented, zero-padded layer matrix.

    Real weights occupy [:n_in, :n_out]; the bias goes into row n_in (which
    lines up with the "ones lane" of this layer's input); optionally column
    n_out gets a 1.0 in the bias row so the ones lane propagates forward
    (exact through ReLU and through the bf16 cast, since 1.0 and 0.0 are exact).
    """
    n_in, n_out = w.shape
    m = jnp.zeros((in_pad, out_pad), jnp.float32)
    m = m.at[:n_in, :n_out].set(w)
    m = m.at[n_in, :n_out].set(b)
    if emit_ones_col:
        m = m.at[n_in, n_out].set(1.0)
    return m


def make_fused_params(p):
    # Encoders as block-diagonal layers (team weights shared for team & opp).
    w1 = _block_diag([p["env_w1"], p["team_w1"], p["team_w1"]])     # [116, 58]
    b1 = jnp.concatenate([p["env_b1"], p["team_b1"], p["team_b1"]])
    w2 = _block_diag([p["env_w2"], p["team_w2"], p["team_w2"]])     # [58, 192]
    b2 = jnp.concatenate([p["env_b2"], p["team_b2"], p["team_b2"]])

    # Fold per-target cumsum into the classifier weights via a block-diagonal
    # upper-triangular matrix T (identity block for the 'Win' head).
    t_np = np.zeros((TOTAL_TARGETS, TOTAL_TARGETS), np.float32)
    for _name, off, n, cum in CLASSIFIER_SEGMENTS:
        blk = np.triu(np.ones((n, n), np.float32)) if cum else np.eye(n, dtype=np.float32)
        t_np[off:off + n, off:off + n] = blk
    t = jnp.asarray(t_np)
    w5 = p["cls_w"] @ t                                             # [64, 45]
    b5 = p["cls_b"] @ t

    # Layer-4/5 fold: ffn's second Linear has no nonlinearity before the
    # classifiers, so fold it straight into the (cumsum-folded) classifier.
    w45 = p["ffn_w2"] @ w5                                          # [96, 45]
    b45 = p["ffn_b2"] @ w5 + b5                                     # [45]

    a0 = _aug_layer(w1, b1, 128, 128, True)            # x     -> h1
    a1 = _aug_layer(w2, b2, 128, 256, True)            # h1    -> feats
    a2 = _aug_layer(p["ffn_w1"], p["ffn_b1"], 256, 128, True)   # feats -> ffn_hid
    a3 = _aug_layer(w45, b45, 128, 128, False)         # ffn_hid -> targets

    # Pack the four layers into one [384, 256] slab with zero waste.
    slab = jnp.zeros((SLAB_ROWS, SLAB_W), jnp.float32)

    def put(s, a, slot):
        r0, r1, c0, c1 = slot
        assert a.shape == (r1 - r0, c1 - c0)
        return s.at[r0:r1, c0:c1].set(a)

    slab = put(slab, a0, SLOT_L0)
    slab = put(slab, a1, SLOT_L1)
    slab = put(slab, a2, SLOT_L2)
    slab = put(slab, a3, SLOT_L3)
    # bf16 operands for the MXU (accumulation stays f32 in the kernel).
    return {"emb": p["emb"], "w_slab": slab.astype(jnp.bfloat16)}


# ----------------------------------------------------------------------------
# Pallas kernel: 4 bf16 matmuls (f32 accumulate) + f32 ReLU/sigmoid
# ----------------------------------------------------------------------------
def _slab(w_ref, slot):
    r0, r1, c0, c1 = slot
    return w_ref[r0:r1, c0:c1]      # static, (16,128)-tile-aligned slice


def _mlb_kernel(x_ref, w_ref, out_ref):
    def mm(a, b):
        return jnp.dot(a, b, preferred_element_type=jnp.float32)

    w0 = _slab(w_ref, SLOT_L0)   # x(128)     -> h1(128)
    w1 = _slab(w_ref, SLOT_L1)   # h1(128)    -> feats(256)
    w2 = _slab(w_ref, SLOT_L2)   # feats(256) -> ffn_hid(128)
    w3 = _slab(w_ref, SLOT_L3)   # ffn_hid    -> targets(128), cumsum+ffn_w2 folded

    # bf16 operands at the MXU, f32 accumulation; ReLU / sigmoid in f32
    # (v5e has no bf16 VPU/EUP path).
    h = jnp.maximum(mm(x_ref[...], w0), 0.0)
    h = jnp.maximum(mm(h.astype(jnp.bfloat16), w1), 0.0)
    h = jnp.maximum(mm(h.astype(jnp.bfloat16), w2), 0.0)
    logits = mm(h.astype(jnp.bfloat16), w3)
    out_ref[...] = jax.nn.sigmoid(logits)


def _round_up(n, m):
    return -(-n // m) * m


def mlb_forward_pallas(x, fused, block_rows=1024):
    """x: int32 [B, 14].  Returns dict of probabilities (matches torch module)."""
    emb, w_slab = fused["emb"], fused["w_slab"]
    B = x.shape[0]

    # Embedding gathers stay in XLA; a single concatenate builds the
    # bias-augmented, lane-dense bf16 input slab (one HBM round trip).
    # TODO(synk): move the gathers + pad build into the kernel (int32 x block
    # + VMEM-resident tables) to remove this last XLA-side intermediate.
    def g(name, col):
        return jnp.take(emb[name], x[:, col], axis=0)

    parts = [g("years", 0), g("months", 1), g("dow", 2), g("time_of_day", 3),
             g("parks", 4), g("leagues", 5), g("umps", 6), g("home_away", 13),
             g("teams", 10), g("pitchers", 11), g("managers", 12),
             g("teams", 7), g("pitchers", 8), g("managers", 9)]
    ones = jnp.ones((B, 1), jnp.float32)
    zpad = jnp.zeros((B, X_PAD - X_DIM - 1), jnp.float32)
    x_aug = jnp.concatenate(parts + [ones, zpad], axis=1).astype(jnp.bfloat16)

    # Batch blocking: multiple of 16 sublanes (bf16 tile); >= 2 grid steps
    # whenever B allows it so the "parallel" axis shards across both
    # TensorCores on v7x; capped at block_rows (default 1024 keeps the
    # per-step VMEM footprint ~6 MiB, under v5e's 16 MiB default scoped limit;
    # raise block_rows + vmem_limit_bytes for very large B on v6e/v7x).
    bm = min(block_rows, _round_up(max(-(-B // 2), 1), 16))
    b_pad = _round_up(B, bm)
    if b_pad > B:
        x_aug = jnp.concatenate(
            [x_aug, jnp.zeros((b_pad - B, X_PAD), jnp.bfloat16)], axis=0)
    grid = (b_pad // bm,)

    probs = pl.pallas_call(
        _mlb_kernel,
        out_shape=jax.ShapeDtypeStruct((b_pad, OUT_PAD), jnp.float32),
        grid=grid,
        in_specs=[pl.BlockSpec((bm, X_PAD), lambda i: (i, 0)),
                  pl.BlockSpec((SLAB_ROWS, SLAB_W), lambda i: (0, 0))],
        out_specs=pl.BlockSpec((bm, OUT_PAD), lambda i: (i, 0)),
        compiler_params=pltpu.CompilerParams(
            dimension_semantics=("parallel",)),
    )(x_aug, w_slab)

    # Slice off batch padding and the padded (sigmoid(0)=0.5) target lanes.
    yh = {}
    for name, off, n, _cum in CLASSIFIER_SEGMENTS:
        seg = probs[:B, off:off + n]
        yh[name] = seg[:, 0] if name == "Win" else seg
    return yh


# ----------------------------------------------------------------------------
# Pure-JAX f32 reference (same eval-mode semantics, unfused) for correctness
# ----------------------------------------------------------------------------
def mlb_forward_ref(x, params):
    emb = params["emb"]

    def g(name, col):
        return jnp.take(emb[name], x[:, col], axis=0)

    env = jnp.concatenate(
        [g("years", 0), g("months", 1), g("dow", 2), g("time_of_day", 3),
         g("parks", 4), g("leagues", 5), g("umps", 6), g("home_away", 13)],
        axis=1)
    team = jnp.concatenate([g("teams", 10), g("pitchers", 11), g("managers", 12)], axis=1)
    opp = jnp.concatenate([g("teams", 7), g("pitchers", 8), g("managers", 9)], axis=1)

    relu = lambda v: jnp.maximum(v, 0.0)
    env = relu(relu(env @ params["env_w1"] + params["env_b1"])
               @ params["env_w2"] + params["env_b2"])
    tfun = lambda v: relu(relu(v @ params["team_w1"] + params["team_b1"])
                          @ params["team_w2"] + params["team_b2"])
    team, opp = tfun(team), tfun(opp)

    feats = jnp.concatenate([env, team, opp], axis=1)
    feats = relu(feats @ params["ffn_w1"] + params["ffn_b1"])
    feats = feats @ params["ffn_w2"] + params["ffn_b2"]

    logits = feats @ params["cls_w"] + params["cls_b"]
    yh = {}
    for name, off, n, do_cumsum in CLASSIFIER_SEGMENTS:
        seg = logits[:, off:off + n]
        if do_cumsum:
            yh[name] = jax.nn.sigmoid(jnp.cumsum(seg, axis=-1))
        else:
            yh[name] = jax.nn.sigmoid(seg[:, 0])
    return yh


# ----------------------------------------------------------------------------
if __name__ == "__main__":
    B = 8
    params = make_params(seed=0)
    fused = make_fused_params(params)

    # Deterministic integer inputs x[:, col] valid for each embedder.
    col_levels = [
        INPUT_LEVELS["years"].n_levels, INPUT_LEVELS["months"].n_levels,
        INPUT_LEVELS["dow"].n_levels, INPUT_LEVELS["time_of_day"].n_levels,
        INPUT_LEVELS["parks"].n_levels, INPUT_LEVELS["leagues"].n_levels,
        INPUT_LEVELS["umps"].n_levels,
        INPUT_LEVELS["teams"].n_levels, INPUT_LEVELS["pitchers"].n_levels,
        INPUT_LEVELS["managers"].n_levels,
        INPUT_LEVELS["teams"].n_levels, INPUT_LEVELS["pitchers"].n_levels,
        INPUT_LEVELS["managers"].n_levels,
        INPUT_LEVELS["home_away"].n_levels,
    ]
    key = jax.random.PRNGKey(0)
    cols = []
    for n_lvl in col_levels:
        key, sub = jax.random.split(key)
        cols.append(jax.random.randint(sub, (B, 1), 0, n_lvl, dtype=jnp.int32))
    x = jnp.concatenate(cols, axis=1)                         # [B, 14] int32

    fwd = jax.jit(mlb_forward_pallas)
    yh = jax.block_until_ready(fwd(x, fused))
    yr = jax.block_until_ready(mlb_forward_ref(x, params))

    # bf16 MXU operands (weights + inter-layer activations) vs an f32
    # reference: probability-space error is ~1e-3; tolerance gives ~3x margin
    # while still catching layout / bias / cumsum-fold bugs (>= 3e-2 errors).
    for k in yr:
        np.testing.assert_allclose(np.asarray(yh[k]), np.asarray(yr[k]),
                                   rtol=2e-2, atol=1e-2)
    print("KERNEL_OK")
</pallas_src>

<mosaic_0001>
module attributes {stable_mosaic.version = 11 : i64} {
  func.func @_mlb_kernel(%arg0: i32, %arg1: memref<16x128xbf16, #tpu.memory_space<vmem>>, %arg2: memref<384x256xbf16, #tpu.memory_space<vmem>>, %arg3: memref<16x128xf32, #tpu.memory_space<vmem>>) attributes {dimension_semantics = [#tpu.dimension_semantics<parallel>], iteration_bounds = array<i64: 1>, scalar_prefetch = 0 : i64, scratch_operands = 0 : i64, tpu.core_type = #tpu.core_type<tc>, window_params = [{transform_indices = @transform_0, window_bounds = array<i64: 16, 128>}, {pipeline_mode = #tpu.pipeline_mode<synchronous>, transform_indices = @transform_1, window_bounds = array<i64: 384, 256>}, {transform_indices = @transform_2, window_bounds = array<i64: 16, 128>}]} {
    %c128 = arith.constant 128 : index
    %c128_0 = arith.constant 128 : index
    %0 = vector.load %arg2[%c128, %c128_0] : memref<384x256xbf16, #tpu.memory_space<vmem>>, vector<128x128xbf16>
    %c0 = arith.constant 0 : index
    %c0_1 = arith.constant 0 : index
    %1 = vector.load %arg2[%c0, %c0_1] : memref<384x256xbf16, #tpu.memory_space<vmem>>, vector<128x256xbf16>
    %c128_2 = arith.constant 128 : index
    %c0_3 = arith.constant 0 : index
    %2 = vector.load %arg2[%c128_2, %c0_3] : memref<384x256xbf16, #tpu.memory_space<vmem>>, vector<256x128xbf16>
    %c256 = arith.constant 256 : index
    %c128_4 = arith.constant 128 : index
    %3 = vector.load %arg2[%c256, %c128_4] : memref<384x256xbf16, #tpu.memory_space<vmem>>, vector<128x128xbf16>
    %c0_5 = arith.constant 0 : index
    %c0_6 = arith.constant 0 : index
    %4 = vector.load %arg1[%c0_5, %c0_6] : memref<16x128xbf16, #tpu.memory_space<vmem>>, vector<16x128xbf16>
    %cst = arith.constant dense<0.000000e+00> : vector<16x128xf32>
    %5 = tpu.matmul %4, %0, %cst {dimension_numbers = #tpu.dot_dimension_numbers<[1], [0], [0], [1], [0, 0, 1, 1], [], []>} : vector<16x128xbf16>, vector<128x128xbf16>, vector<16x128xf32> -> vector<16x128xf32>
    %cst_7 = arith.constant 0.000000e+00 : f32
    %6 = vector.broadcast %cst_7 : f32 to vector<16x128xf32>
    %7 = arith.maximumf %5, %6 : vector<16x128xf32>
    %8 = arith.truncf %7 : vector<16x128xf32> to vector<16x128xbf16>
    %cst_8 = arith.constant dense<0.000000e+00> : vector<16x256xf32>
    %9 = tpu.matmul %8, %1, %cst_8 {dimension_numbers = #tpu.dot_dimension_numbers<[1], [0], [0], [1], [0, 0, 1, 1], [], []>} : vector<16x128xbf16>, vector<128x256xbf16>, vector<16x256xf32> -> vector<16x256xf32>
    %cst_9 = arith.constant 0.000000e+00 : f32
    %10 = vector.broadcast %cst_9 : f32 to vector<16x256xf32>
    %11 = arith.maximumf %9, %10 : vector<16x256xf32>
    %12 = arith.truncf %11 : vector<16x256xf32> to vector<16x256xbf16>
    %cst_10 = arith.constant dense<0.000000e+00> : vector<16x128xf32>
    %13 = tpu.matmul %12, %2, %cst_10 {dimension_numbers = #tpu.dot_dimension_numbers<[1], [0], [0], [1], [0, 0, 1, 1], [], []>} : vector<16x256xbf16>, vector<256x128xbf16>, vector<16x128xf32> -> vector<16x128xf32>
    %cst_11 = arith.constant 0.000000e+00 : f32
    %14 = vector.broadcast %cst_11 : f32 to vector<16x128xf32>
    %15 = arith.maximumf %13, %14 : vector<16x128xf32>
    %16 = arith.truncf %15 : vector<16x128xf32> to vector<16x128xbf16>
    %cst_12 = arith.constant dense<0.000000e+00> : vector<16x128xf32>
    %17 = tpu.matmul %16, %3, %cst_12 {dimension_numbers = #tpu.dot_dimension_numbers<[1], [0], [0], [1], [0, 0, 1, 1], [], []>} : vector<16x128xbf16>, vector<128x128xbf16>, vector<16x128xf32> -> vector<16x128xf32>
    %18 = arith.negf %17 : vector<16x128xf32>
    %19 = math.exp %18 : vector<16x128xf32>
    %cst_13 = arith.constant 1.000000e+00 : f32
    %20 = vector.broadcast %cst_13 : f32 to vector<16x128xf32>
    %21 = arith.addf %20, %19 : vector<16x128xf32>
    %22 = arith.divf %20, %21 : vector<16x128xf32>
    %c0_14 = arith.constant 0 : index
    %c0_15 = arith.constant 0 : index
    %23 = vector.load %arg3[%c0_14, %c0_15] : memref<16x128xf32, #tpu.memory_space<vmem>>, vector<16x128xf32>
    tpu.vector_store %arg3[%c0_14, %c0_15], %22 {strides = array<i32>} : memref<16x128xf32, #tpu.memory_space<vmem>>, vector<16x128xf32>,
    return
  }
  func.func @transform_0(%arg0: i32) -> (i32, i32) {
    %c0_i32 = arith.constant 0 : i32
    %c0_i32_0 = arith.constant 0 : i32
    return %arg0, %c0_i32 : i32, i32
  }
  func.func @transform_1(%arg0: i32) -> (i32, i32) {
    %c0_i32 = arith.constant 0 : i32
    %c0_i32_0 = arith.constant 0 : i32
    %c0_i32_1 = arith.constant 0 : i32
    return %c0_i32, %c0_i32_0 : i32, i32
  }
  func.func @transform_2(%arg0: i32) -> (i32, i32) {
    %c0_i32 = arith.constant 0 : i32
    %c0_i32_0 = arith.constant 0 : i32
    return %arg0, %c0_i32 : i32, i32
  }
}

</mosaic_0001>

<llo_original>
// kernel: mlb_forward_pallas.1
$region0: #{mlb_forward_pallas.1}
  #allocation0 [shape = 'u32[]', space=smem, size = 0x4, offset = 0x4, fixed_abs, tag = 'smem constant byte address 0x4 - core index']
  #allocation1 [shape = 'u32[72,128]{1,0:T(1,128)}', space=vmem, size = 0x9000, scoped, tag = 'internal scratch']
  %s0 = inlined_call_operand.vmem [shape: bf16[16,128], index: 0, kind: input, shape index: {}]
  %s1 = inlined_call_operand.vmem [shape: bf16[384,256], index: 1, kind: input, shape index: {}]
  %s2 = inlined_call_operand.vmem [shape: f32[16,128], index: 2, kind: output, shape index: {}]
  %s3 = sld [smem:[#allocation0]]
  $region18: #{mlb_forward_pallas.1} parent=0
    _
  %s5 = ssub.s32 1, %s3
  %s6 = scalar_select 0, %s5, %s3
  // Predicated region
  $region2: #{mlb_forward_pallas.1} parent=0 // pred_check
    _
  $region3: #{mlb_forward_pallas.1} parent=0 // pred_check_branch
    %8 = sbr.rel (0) target = $region5
  $region4: #{mlb_forward_pallas.1} parent=0 // pred_region
    _
  $region5: #{mlb_forward_pallas.1} parent=0 // pred_fallthru
    _
  // Predicated region
  $region6: #{mlb_forward_pallas.1} parent=0 // pred_check
    _
  $region7: #{mlb_forward_pallas.1} parent=0 // pred_check_branch
    %10 = sbr.rel (0) target = $region9
  $region8: #{mlb_forward_pallas.1} parent=0 // pred_region
    _
  $region9: #{mlb_forward_pallas.1} parent=0 // pred_fallthru
    _
  %v11 = vld [vmem:[%s1 + $0x84] sm:$0xf]
  %v12 = vld [vmem:[%s1 + $0x8c] sm:$0xf]
  %v13 = vld [vmem:[%s1 + $0x94] sm:$0xf]
  %v14 = vld [vmem:[%s1 + $0x9c] sm:$0xf]
  %v15 = vld [vmem:[%s1 + $0xa4] sm:$0xf]
  %v16 = vld [vmem:[%s1 + $0xac] sm:$0xf]
  %v17 = vld [vmem:[%s1 + $0xb4] sm:$0xf]
  %v18 = vld [vmem:[%s1 + $0xbc] sm:$0xf]
  %v19 = vld [vmem:[%s1 + $0xc4] sm:$0xf]
  %v20 = vld [vmem:[%s1 + $0xcc] sm:$0xf]
  %v21 = vld [vmem:[%s1 + $0xd4] sm:$0xf]
  %v22 = vld [vmem:[%s1 + $0xdc] sm:$0xf]
  %v23 = vld [vmem:[%s1 + $0xe4] sm:$0xf]
  %v24 = vld [vmem:[%s1 + $0xec] sm:$0xf]
  %v25 = vld [vmem:[%s1 + $0xf4] sm:$0xf]
  %v26 = vld [vmem:[%s1 + $0xfc] sm:$0xf]
  %v27 = vld [vmem:[%s1] sm:$0xff]
  %v28 = vld [vmem:[%s1 + $0x8] sm:$0xff]
  %v29 = vld [vmem:[%s1 + $0x10] sm:$0xff]
  %v30 = vld [vmem:[%s1 + $0x18] sm:$0xff]
  %v31 = vld [vmem:[%s1 + $0x20] sm:$0xff]
  %v32 = vld [vmem:[%s1 + $0x28] sm:$0xff]
  %v33 = vld [vmem:[%s1 + $0x30] sm:$0xff]
  %v34 = vld [vmem:[%s1 + $0x38] sm:$0xff]
  %v35 = vld [vmem:[%s1 + $0x40] sm:$0xff]
  %v36 = vld [vmem:[%s1 + $0x48] sm:$0xff]
  %v37 = vld [vmem:[%s1 + $0x50] sm:$0xff]
  %v38 = vld [vmem:[%s1 + $0x58] sm:$0xff]
  %v39 = vld [vmem:[%s1 + $0x60] sm:$0xff]
  %v40 = vld [vmem:[%s1 + $0x68] sm:$0xff]
  %v41 = vld [vmem:[%s1 + $0x70] sm:$0xff]
  %v42 = vld [vmem:[%s1 + $0x78] sm:$0xff]
  %v43 = vld [vmem:[%s1 + $0x80] sm:$0xf]
  %v44 = vld [vmem:[%s1 + $0x88] sm:$0xf]
  %v45 = vld [vmem:[%s1 + $0x90] sm:$0xf]
  %v46 = vld [vmem:[%s1 + $0x98] sm:$0xf]
  %v47 = vld [vmem:[%s1 + $0xa0] sm:$0xf]
  %v48 = vld [vmem:[%s1 + $0xa8] sm:$0xf]
  %v49 = vld [vmem:[%s1 + $0xb0] sm:$0xf]
  %v50 = vld [vmem:[%s1 + $0xb8] sm:$0xf]
  %v51 = vld [vmem:[%s1 + $0xc0] sm:$0xf]
  %v52 = vld [vmem:[%s1 + $0xc8] sm:$0xf]
  %v53 = vld [vmem:[%s1 + $0xd0] sm:$0xf]
  %v54 = vld [vmem:[%s1 + $0xd8] sm:$0xf]
  %v55 = vld [vmem:[%s1 + $0xe0] sm:$0xf]
  %v56 = vld [vmem:[%s1 + $0xe8] sm:$0xf]
  %v57 = vld [vmem:[%s1 + $0xf0] sm:$0xf]
  %v58 = vld [vmem:[%s1 + $0xf8] sm:$0xf]
  %v59 = vld [vmem:[%s1 + $0x100] sm:$0xf]
  %v60 = vld [vmem:[%s1 + $0x108] sm:$0xf]
  %v61 = vld [vmem:[%s1 + $0x110] sm:$0xf]
  %v62 = vld [vmem:[%s1 + $0x118] sm:$0xf]
  %v63 = vld [vmem:[%s1 + $0x120] sm:$0xf]
  %v64 = vld [vmem:[%s1 + $0x128] sm:$0xf]
  %v65 = vld [vmem:[%s1 + $0x130] sm:$0xf]
  %v66 = vld [vmem:[%s1 + $0x138] sm:$0xf]
  %v67 = vld [vmem:[%s1 + $0x140] sm:$0xf]
  %v68 = vld [vmem:[%s1 + $0x148] sm:$0xf]
  %v69 = vld [vmem:[%s1 + $0x150] sm:$0xf]
  %v70 = vld [vmem:[%s1 + $0x158] sm:$0xf]
  %v71 = vld [vmem:[%s1 + $0x160] sm:$0xf]
  %v72 = vld [vmem:[%s1 + $0x168] sm:$0xf]
  %v73 = vld [vmem:[%s1 + $0x170] sm:$0xf]
  %v74 = vld [vmem:[%s1 + $0x178] sm:$0xf]
  %v75 = vld [vmem:[%s1 + $0x104] sm:$0xf]
  %v76 = vld [vmem:[%s1 + $0x10c] sm:$0xf]
  %v77 = vld [vmem:[%s1 + $0x114] sm:$0xf]
  %v78 = vld [vmem:[%s1 + $0x11c] sm:$0xf]
  %v79 = vld [vmem:[%s1 + $0x124] sm:$0xf]
  %v80 = vld [vmem:[%s1 + $0x12c] sm:$0xf]
  %v81 = vld [vmem:[%s1 + $0x134] sm:$0xf]
  %v82 = vld [vmem:[%s1 + $0x13c] sm:$0xf]
  %v83 = vld [vmem:[%s1 + $0x144] sm:$0xf]
  %v84 = vld [vmem:[%s1 + $0x14c] sm:$0xf]
  %v85 = vld [vmem:[%s1 + $0x154] sm:$0xf]
  %v86 = vld [vmem:[%s1 + $0x15c] sm:$0xf]
  %v87 = vld [vmem:[%s1 + $0x164] sm:$0xf]
  %v88 = vld [vmem:[%s1 + $0x16c] sm:$0xf]
  %v89 = vld [vmem:[%s1 + $0x174] sm:$0xf]
  %v90 = vld [vmem:[%s1 + $0x17c] sm:$0xf]
  %v91 = vld [vmem:[%s0] sm:$0xf]
  %v92 = vld [vmem:[%s0 + $0x4] sm:$0xf]
  %v95 = vunpack.c.l.b16 %v91
  %v96 = vunpack.c.l.b16 %v92
  %v97 = vpack.c.b16 %v96, %v95
  %v115 = vunpack.c.l.b16 %v11
  %v116 = vunpack.c.l.b16 %v12
  %v117 = vunpack.c.l.b16 %v13
  %v118 = vunpack.c.l.b16 %v14
  %v119 = vunpack.c.l.b16 %v15
  %v120 = vunpack.c.l.b16 %v16
  %v121 = vunpack.c.l.b16 %v17
  %v122 = vunpack.c.l.b16 %v18
  %v123 = vunpack.c.l.b16 %v19
  %v124 = vunpack.c.l.b16 %v20
  %v125 = vunpack.c.l.b16 %v21
  %v126 = vunpack.c.l.b16 %v22
  %v127 = vunpack.c.l.b16 %v23
  %v128 = vunpack.c.l.b16 %v24
  %v129 = vunpack.c.l.b16 %v25
  %v130 = vunpack.c.l.b16 %v26
  %v131 = vpack.c.b16 %v116, %v115
  %v132 = vpack.c.b16 %v118, %v117
  %v133 = vpack.c.b16 %v120, %v119
  %v134 = vpack.c.b16 %v122, %v121
  %v135 = vpack.c.b16 %v124, %v123
  %v136 = vpack.c.b16 %v126, %v125
  %v137 = vpack.c.b16 %v128, %v127
  %v138 = vpack.c.b16 %v130, %v129
  %147 = vmatpush.bf16.msra.mxu0 %v138
  %148 = vmatpush.bf16.msra.mxu0 %v137
  %149 = vmatpush.bf16.msra.mxu0 %v136
  %150 = vmatpush.bf16.msra.mxu0 %v135
  %151 = vmatpush.bf16.msra.mxu0 %v134
  %152 = vmatpush.bf16.msra.mxu0 %v133
  %153 = vmatpush.bf16.msra.mxu0 %v132
  %154 = vmatpush.bf16.msra.mxu0 %v131
  %155 = vmatmul.bf16.gmra.mxu0 %v97
  %v156 = vpop.f32.mrf.mxu0
  %v157 = vadd.f32 0.0, %v156
  %v158 = vpop.f32.mrf.mxu0
  %v159 = vadd.f32 0.0, %v158
  %160 = vdwg.mxu0
  %v161 = vmax.f32 %v157, 0.0
  %v162 = vmax.f32 %v159, 0.0
  %v163 = vpack.c.bf16 %v162, %v161
  %v180 = vunpack.c.l.b16 %v27
  %v181 = vunpack.c.h.b16 %v27
  %v182 = vunpack.c.l.b16 %v28
  %v183 = vunpack.c.h.b16 %v28
  %v184 = vunpack.c.l.b16 %v29
  %v185 = vunpack.c.h.b16 %v29
  %v186 = vunpack.c.l.b16 %v30
  %v187 = vunpack.c.h.b16 %v30
  %v188 = vunpack.c.l.b16 %v31
  %v189 = vunpack.c.h.b16 %v31
  %v190 = vunpack.c.l.b16 %v32
  %v191 = vunpack.c.h.b16 %v32
  %v192 = vunpack.c.l.b16 %v33
  %v193 = vunpack.c.h.b16 %v33
  %v194 = vunpack.c.l.b16 %v34
  %v195 = vunpack.c.h.b16 %v34
  %v196 = vunpack.c.l.b16 %v35
  %v197 = vunpack.c.h.b16 %v35
  %v198 = vunpack.c.l.b16 %v36
  %v199 = vunpack.c.h.b16 %v36
  %v200 = vunpack.c.l.b16 %v37
  %v201 = vunpack.c.h.b16 %v37
  %v202 = vunpack.c.l.b16 %v38
  %v203 = vunpack.c.h.b16 %v38
  %v204 = vunpack.c.l.b16 %v39
  %v205 = vunpack.c.h.b16 %v39
  %v206 = vunpack.c.l.b16 %v40
  %v207 = vunpack.c.h.b16 %v40
  %v208 = vunpack.c.l.b16 %v41
  %v209 = vunpack.c.h.b16 %v41
  %v210 = vunpack.c.l.b16 %v42
  %v211 = vunpack.c.h.b16 %v42
  %v212 = vpack.c.b16 %v182, %v180
  %v213 = vpack.c.b16 %v183, %v181
  %v214 = vpack.c.b16 %v186, %v184
  %v215 = vpack.c.b16 %v187, %v185
  %v216 = vpack.c.b16 %v190, %v188
  %v217 = vpack.c.b16 %v191, %v189
  %v218 = vpack.c.b16 %v194, %v192
  %v219 = vpack.c.b16 %v195, %v193
  %v220 = vpack.c.b16 %v198, %v196
  %v221 = vpack.c.b16 %v199, %v197
  %v222 = vpack.c.b16 %v202, %v200
  %v223 = vpack.c.b16 %v203, %v201
  %v224 = vpack.c.b16 %v206, %v204
  %v225 = vpack.c.b16 %v207, %v205
  %v226 = vpack.c.b16 %v210, %v208
  %v227 = vpack.c.b16 %v211, %v209
  %244 = vmatpush.bf16.msra.mxu0 %v226
  %245 = vmatpush.bf16.msra.mxu0 %v224
  %246 = vmatpush.bf16.msra.mxu0 %v222
  %247 = vmatpush.bf16.msra.mxu0 %v220
  %248 = vmatpush.bf16.msra.mxu0 %v218
  %249 = vmatpush.bf16.msra.mxu0 %v216
  %250 = vmatpush.bf16.msra.mxu0 %v214
  %251 = vmatpush.bf16.msra.mxu0 %v212
  %252 = vmatmul.bf16.gmra.mxu0 %v163
  %v253 = vpop.f32.mrf.mxu0
  %v254 = vadd.f32 0.0, %v253
  %v255 = vpop.f32.mrf.mxu0
  %v256 = vadd.f32 0.0, %v255
  %257 = vdwg.mxu0
  %258 = vmatpush.bf16.msra.mxu0 %v227
  %259 = vmatpush.bf16.msra.mxu0 %v225
  %260 = vmatpush.bf16.msra.mxu0 %v223
  %261 = vmatpush.bf16.msra.mxu0 %v221
  %262 = vmatpush.bf16.msra.mxu0 %v219
  %263 = vmatpush.bf16.msra.mxu0 %v217
  %264 = vmatpush.bf16.msra.mxu0 %v215
  %265 = vmatpush.bf16.msra.mxu0 %v213
  %266 = vmatmul.bf16.gmra.mxu0 %v163
  %v267 = vpop.f32.mrf.mxu0
  %v268 = vadd.f32 0.0, %v267
  %v269 = vpop.f32.mrf.mxu0
  %v270 = vadd.f32 0.0, %v269
  %271 = vdwg.mxu0
  %v272 = vmax.f32 %v254, 0.0
  %v273 = vmax.f32 %v268, 0.0
  %v274 = vmax.f32 %v256, 0.0
  %v275 = vmax.f32 %v270, 0.0
  %v276 = vpack.c.bf16 %v274, %v272
  %v277 = vpack.c.bf16 %v275, %v273
  %v310 = vunpack.c.l.b16 %v43
  %v311 = vunpack.c.l.b16 %v44
  %v312 = vunpack.c.l.b16 %v45
  %v313 = vunpack.c.l.b16 %v46
  %v314 = vunpack.c.l.b16 %v47
  %v315 = vunpack.c.l.b16 %v48
  %v316 = vunpack.c.l.b16 %v49
  %v317 = vunpack.c.l.b16 %v50
  %v318 = vunpack.c.l.b16 %v51
  %v319 = vunpack.c.l.b16 %v52
  %v320 = vunpack.c.l.b16 %v53
  %v321 = vunpack.c.l.b16 %v54
  %v322 = vunpack.c.l.b16 %v55
  %v323 = vunpack.c.l.b16 %v56
  %v324 = vunpack.c.l.b16 %v57
  %v325 = vunpack.c.l.b16 %v58
  %v326 = vunpack.c.l.b16 %v59
  %v327 = vunpack.c.l.b16 %v60
  %v328 = vunpack.c.l.b16 %v61
  %v329 = vunpack.c.l.b16 %v62
  %v330 = vunpack.c.l.b16 %v63
  %v331 = vunpack.c.l.b16 %v64
  %v332 = vunpack.c.l.b16 %v65
  %v333 = vunpack.c.l.b16 %v66
  %v334 = vunpack.c.l.b16 %v67
  %v335 = vunpack.c.l.b16 %v68
  %v336 = vunpack.c.l.b16 %v69
  %v337 = vunpack.c.l.b16 %v70
  %v338 = vunpack.c.l.b16 %v71
  %v339 = vunpack.c.l.b16 %v72
  %v340 = vunpack.c.l.b16 %v73
  %v341 = vunpack.c.l.b16 %v74
  %v342 = vpack.c.b16 %v311, %v310
  %v343 = vpack.c.b16 %v313, %v312
  %v344 = vpack.c.b16 %v315, %v314
  %v345 = vpack.c.b16 %v317, %v316
  %v346 = vpack.c.b16 %v319, %v318
  %v347 = vpack.c.b16 %v321, %v320
  %v348 = vpack.c.b16 %v323, %v322
  %v349 = vpack.c.b16 %v325, %v324
  %v350 = vpack.c.b16 %v327, %v326
  %v351 = vpack.c.b16 %v329, %v328
  %v352 = vpack.c.b16 %v331, %v330
  %v353 = vpack.c.b16 %v333, %v332
  %v354 = vpack.c.b16 %v335, %v334
  %v355 = vpack.c.b16 %v337, %v336
  %v356 = vpack.c.b16 %v339, %v338
  %v357 = vpack.c.b16 %v341, %v340
  %374 = vmatpush.bf16.msra.mxu0 %v349
  %375 = vmatpush.bf16.msra.mxu0 %v348
  %376 = vmatpush.bf16.msra.mxu0 %v347
  %377 = vmatpush.bf16.msra.mxu0 %v346
  %378 = vmatpush.bf16.msra.mxu0 %v345
  %379 = vmatpush.bf16.msra.mxu0 %v344
  %380 = vmatpush.bf16.msra.mxu0 %v343
  %381 = vmatpush.bf16.msra.mxu0 %v342
  %382 = vmatmul.bf16.gmra.mxu0 %v276
  %v383 = vpop.f32.mrf.mxu0
  %v384 = vadd.f32 0.0, %v383
  %v385 = vpop.f32.mrf.mxu0
  %v386 = vadd.f32 0.0, %v385
  %387 = vdwg.mxu0
  %388 = vmatpush.bf16.msra.mxu0 %v357
  %389 = vmatpush.bf16.msra.mxu0 %v356
  %390 = vmatpush.bf16.msra.mxu0 %v355
  %391 = vmatpush.bf16.msra.mxu0 %v354
  %392 = vmatpush.bf16.msra.mxu0 %v353
  %393 = vmatpush.bf16.msra.mxu0 %v352
  %394 = vmatpush.bf16.msra.mxu0 %v351
  %395 = vmatpush.bf16.msra.mxu0 %v350
  %396 = vmatmul.bf16.gmra.mxu0 %v277
  %v397 = vpop.f32.mrf.mxu0
  %v398 = vadd.f32 %v384, %v397
  %v399 = vpop.f32.mrf.mxu0
  %v400 = vadd.f32 %v386, %v399
  %401 = vdwg.mxu0
  %v402 = vmax.f32 %v398, 0.0
  %v403 = vmax.f32 %v400, 0.0
  %v404 = vpack.c.bf16 %v403, %v402
  %v421 = vunpack.c.l.b16 %v75
  %v422 = vunpack.c.l.b16 %v76
  %v423 = vunpack.c.l.b16 %v77
  %v424 = vunpack.c.l.b16 %v78
  %v425 = vunpack.c.l.b16 %v79
  %v426 = vunpack.c.l.b16 %v80
  %v427 = vunpack.c.l.b16 %v81
  %v428 = vunpack.c.l.b16 %v82
  %v429 = vunpack.c.l.b16 %v83
  %v430 = vunpack.c.l.b16 %v84
  %v431 = vunpack.c.l.b16 %v85
  %v432 = vunpack.c.l.b16 %v86
  %v433 = vunpack.c.l.b16 %v87
  %v434 = vunpack.c.l.b16 %v88
  %v435 = vunpack.c.l.b16 %v89
  %v436 = vunpack.c.l.b16 %v90
  %v437 = vpack.c.b16 %v422, %v421
  %v438 = vpack.c.b16 %v424, %v423
  %v439 = vpack.c.b16 %v426, %v425
  %v440 = vpack.c.b16 %v428, %v427
  %v441 = vpack.c.b16 %v430, %v429
  %v442 = vpack.c.b16 %v432, %v431
  %v443 = vpack.c.b16 %v434, %v433
  %v444 = vpack.c.b16 %v436, %v435
  %453 = vmatpush.bf16.msra.mxu0 %v444
  %454 = vmatpush.bf16.msra.mxu0 %v443
  %455 = vmatpush.bf16.msra.mxu0 %v442
  %456 = vmatpush.bf16.msra.mxu0 %v441
  %457 = vmatpush.bf16.msra.mxu0 %v440
  %458 = vmatpush.bf16.msra.mxu0 %v439
  %459 = vmatpush.bf16.msra.mxu0 %v438
  %460 = vmatpush.bf16.msra.mxu0 %v437
  %461 = vmatmul.bf16.gmra.mxu0 %v404
  %v462 = vpop.f32.mrf.mxu0
  %v463 = vadd.f32 0.0, %v462
  %v464 = vpop.f32.mrf.mxu0
  %v465 = vadd.f32 0.0, %v464
  %466 = vdwg.mxu0
  %v467 = vxor.u32 %v463, 2147483648
  %v468 = vxor.u32 %v465, 2147483648
  %v469 = vmul.f32 %v467, 1.442695
  %v470 = vpow.pop %v469
  %v471 = vmul.f32 %v468, 1.442695
  %v472 = vpow.pop %v471
  %v473 = vadd.f32 %v470, 1.0
  %v474 = vadd.f32 %v472, 1.0
  %v475 = vrcp.pop %v473
  %v476 = vmul.f32 %v473, %v475
  %v477 = vsub.f32 1.0, %v476
  %v478 = vmul.f32 %v475, %v477
  %v479 = vadd.f32 %v475, %v478
  %vm480 = vweird.f32 %v473
  %vm481 = vweird.f32 %v475
  %vm482 = vmor %vm480, %vm481
  %v483 = vsel %vm482, %v475, %v479
  %v484 = vand.u32 2147483647, %v473
  %vm485 = vcmp.eq.f32.partialorder %v484, 8.507059e+37
  %v486 = vand.u32 %v473, 2147483648
  %v487 = vor.u32 1.1754944e-38, %v486
  %v488 = vsel %vm485, %v487, %v483
  %v489 = vmul.f32 1.0, %v488
  %v490 = vrcp.pop %v474
  %v491 = vmul.f32 %v474, %v490
  %v492 = vsub.f32 1.0, %v491
  %v493 = vmul.f32 %v490, %v492
  %v494 = vadd.f32 %v490, %v493
  %vm495 = vweird.f32 %v474
  %vm496 = vweird.f32 %v490
  %vm497 = vmor %vm495, %vm496
  %v498 = vsel %vm497, %v490, %v494
  %v499 = vand.u32 2147483647, %v474
  %vm500 = vcmp.eq.f32.partialorder %v499, 8.507059e+37
  %v501 = vand.u32 %v474, 2147483648
  %v502 = vor.u32 1.1754944e-38, %v501
  %v503 = vsel %vm500, %v502, %v498
  %v504 = vmul.f32 1.0, %v503
  %505 = vst [vmem:[%s2] sm:$0xff] %v489
  %506 = vst [vmem:[%s2 + $0x8] sm:$0xff] %v504
  // Predicated region
  $region10: #{mlb_forward_pallas.1} parent=0 // pred_check
    _
  $region11: #{mlb_forward_pallas.1} parent=0 // pred_check_branch
    %508 = sbr.rel (0) target = $region13
  $region12: #{mlb_forward_pallas.1} parent=0 // pred_region
    _
  $region13: #{mlb_forward_pallas.1} parent=0 // pred_fallthru
    _
  // Predicated region
  $region14: #{mlb_forward_pallas.1} parent=0 // pred_check
    _
  $region15: #{mlb_forward_pallas.1} parent=0 // pred_check_branch
    %510 = sbr.rel (0) target = $region17
  $region16: #{mlb_forward_pallas.1} parent=0 // pred_region
    _
  $region17: #{mlb_forward_pallas.1} parent=0 // pred_fallthru
    _

</llo_original>
